<compile_context>
chip_gen: v7x
topology: tpu7x:2x2x1
jax: 0.10.0
libtpu: 0.0.40
codegen_flags: <defaults>
</compile_context>

<pallas_src>
import functools

import jax
import jax.numpy as jnp
from jax import lax
from jax.experimental import pallas as pl
from jax.experimental.pallas import tpu as pltpu


def _round_up(x: int, m: int) -> int:
    return ((x + m - 1) // m) * m


def _ceil_div(a: int, b: int) -> int:
    return -(-a // b)


# ---------------------------------------------------------------------------
# Pass 1: per-spatial-location channel max and mean.
#   x_ref : (1, C, ROWS, W)   o_ref : (1, 2, ROWS, W)  (plane 0 = max, 1 = mean)
# ---------------------------------------------------------------------------
def _chan_reduce_kernel(x_ref, o_ref, *, inv_c: float):
    x = x_ref[0].astype(jnp.float32)                      # (C, ROWS, W)
    # Two full-plane (ROWS, W) stores -> dense vst, no masked sublane partials.
    o_ref[0, 0, :, :] = jnp.max(x, axis=0)
    o_ref[0, 1, :, :] = jnp.sum(x, axis=0) * inv_c        # mean = sum * (1/C)


# ---------------------------------------------------------------------------
# Pass 2 (fused): 2->1 reflect-padded conv + folded BN + sigmoid + x * scale.
#   params_ref : SMEM (2*k*k + 1,)   BN-scaled conv weights + folded BN bias
#   comp_ref   : (1, 2, HP, WP)      full padded compressed map of this image
#   x_ref      : (1, C, ROWS, W)     row tile of x
#   o_ref      : (1, C, ROWS, W)     row tile of the output
# ---------------------------------------------------------------------------
def _fused_conv_bn_sig_mul_kernel(params_ref, comp_ref, x_ref, o_ref, *,
                                  k: int, sub: int, n_sub: int, w: int,
                                  approx_sigmoid: bool):
    rows = sub * n_sub
    halo = sub + k - 1
    base = pl.program_id(1) * rows
    aligned = (sub % 8) == 0
    bias = params_ref[2 * k * k]

    def body(s, carry):
        r0 = base + s * sub            # top row (padded map) of this chunk
        xoff = s * sub                 # top row of this chunk inside the tile
        if aligned:
            r0 = pl.multiple_of(r0, 8)
            xoff = pl.multiple_of(xoff, 8)

        # Conv accumulator: (sub, W) f32, sized to stay in vregs (~<=8 vregs).
        acc = jnp.zeros((sub, w), jnp.float32)
        for cin in range(2):
            # (halo, WP) slab of the padded compressed map for this chunk;
            # sublane slice from an 8-aligned start.
            slab = comp_ref[0, cin, pl.ds(r0, halo), :]
            for dx in range(k):
                # One lane-axis shift per (cin, dx); inner dy taps are
                # sublane-only slices of this slab.
                shifted = slab[:, dx:dx + w]
                for dy in range(k):
                    wv = params_ref[cin * k * k + dy * k + dx]
                    acc = acc + wv * shifted[dy:dy + sub, :]

        z = acc + bias
        # sigmoid(z) = 1 / (1 + exp(-z)); exp runs on the EUP.  The exact
        # divide costs ~nothing next to the 2*k*k-tap MAC loop in an HBM-bound
        # kernel; approx_sigmoid=True switches to the EUP vrcp (expect
        # ~1e-3-level deviation from the f32 reference).
        scale = pl.reciprocal(1.0 + jnp.exp(-z), approx=approx_sigmoid)

        xs = x_ref[0, :, pl.ds(xoff, sub), :].astype(jnp.float32)   # (C, sub, W)
        o_ref[0, :, pl.ds(xoff, sub), :] = (xs * scale[None]).astype(o_ref.dtype)
        return carry

    lax.fori_loop(0, n_sub, body, 0, unroll=n_sub <= 2)


# ---------------------------------------------------------------------------
# Wrapper matching SpatialAttenBlock.forward (BatchNorm in eval mode).
# ---------------------------------------------------------------------------
def spatial_atten_block(x, conv_weight, bn_gamma, bn_beta, bn_mean, bn_var,
                        bn_eps: float = 1e-5, *,
                        target_block_bytes: int = 2 * 1024 * 1024,
                        approx_sigmoid: bool = False):
    """x: (N, C, H, W); conv_weight: (1, 2, k, k) or (2, k, k)."""
    n, c, h, w = x.shape
    w_ = jnp.asarray(conv_weight).reshape(
        2, conv_weight.shape[-2], conv_weight.shape[-1])
    k = int(w_.shape[-1])
    if k % 2 == 0:
        raise ValueError(f"kernel_size must be odd (got {k}): even sizes change "
                         "the spatial shape and the module's x*scale would fail.")
    pad = (k - 1) // 2
    if pad >= h or pad >= w:
        raise ValueError(f"reflect padding {pad} requires H, W > {pad} "
                         f"(got {h}x{w}), as in PyTorch's ReflectionPad2d.")

    # ---- tiling ----------------------------------------------------------
    # `sub` rows per conv-accumulator chunk (acc <= ~32 KB -> stays in vregs);
    # `rows = n_sub * sub` rows per grid step, sized so each step moves
    # ~target_block_bytes of x (amortizes per-step overhead; larger when C is
    # small, smaller when C is large so the double-buffered blocks fit VMEM).
    if h <= 8:
        sub = h                                    # block dim == full dim
    else:
        lane_w = _round_up(w, 128)
        sub = max(8, min(_round_up(h, 8), (8192 // lane_w) // 8 * 8))
    chunk_bytes = c * sub * w * x.dtype.itemsize
    n_sub = max(1, min(int(target_block_bytes // max(1, chunk_bytes)),
                       _ceil_div(h, sub)))
    rows = sub * n_sub
    n_tiles = _ceil_div(h, rows)                   # last tile may be partial

    grid = (n, n_tiles)
    x_spec = pl.BlockSpec((1, c, rows, w), lambda i, j: (i, 0, j, 0))
    cparams = pltpu.CompilerParams(
        dimension_semantics=("parallel", "parallel"),
        vmem_limit_bytes=32 * 1024 * 1024)

    # ---- pass 1: channel max / mean -> comp (N, 2, H, W) f32 --------------
    comp = pl.pallas_call(
        functools.partial(_chan_reduce_kernel, inv_c=1.0 / c),
        out_shape=jax.ShapeDtypeStruct((n, 2, h, w), jnp.float32),
        grid_spec=pltpu.PrefetchScalarGridSpec(
            num_scalar_prefetch=0,
            grid=grid,
            in_specs=[x_spec],
            out_specs=pl.BlockSpec((1, 2, rows, w), lambda i, j: (i, 0, j, 0)),
        ),
        compiler_params=cparams,
    )(x)

    # ---- reflect-pad halo (+ zero rows for a ragged last row tile). -------
    # Touches only the small (N, 2, H, W) map (2/C of one pass over x).
    comp_pad = jnp.pad(comp, ((0, 0), (0, 0), (pad, pad), (pad, pad)),
                       mode="reflect")
    overhang = n_tiles * rows - h
    if overhang:
        comp_pad = jnp.pad(comp_pad, ((0, 0), (0, 0), (0, overhang), (0, 0)))
    hp, wp = comp_pad.shape[-2], comp_pad.shape[-1]

    # ---- fold BatchNorm2d(1) (eval / running-stats mode) into the conv ----
    # TODO(synk): training-mode BatchNorm (batch statistics) not implemented.
    a = (jnp.reshape(bn_gamma, (-1,))[0] /
         jnp.sqrt(jnp.reshape(bn_var, (-1,))[0] + bn_eps)).astype(jnp.float32)
    b = (jnp.reshape(bn_beta, (-1,))[0] -
         jnp.reshape(bn_mean, (-1,))[0] * a).astype(jnp.float32)
    params = jnp.concatenate([w_.astype(jnp.float32).reshape(-1) * a,
                              jnp.reshape(b, (1,))])

    # ---- pass 2 (fused): conv + BN + sigmoid + x * scale -------------------
    out = pl.pallas_call(
        functools.partial(_fused_conv_bn_sig_mul_kernel, k=k, sub=sub,
                          n_sub=n_sub, w=w, approx_sigmoid=approx_sigmoid),
        out_shape=jax.ShapeDtypeStruct((n, c, h, w), x.dtype),
        grid_spec=pltpu.PrefetchScalarGridSpec(
            num_scalar_prefetch=0,
            grid=grid,
            in_specs=[
                pl.BlockSpec(memory_space=pltpu.MemorySpace.SMEM),      # params
                # Full per-image padded map; index map ignores j -> DMA'd once
                # per image (revisited block), resident in VMEM across row tiles.
                pl.BlockSpec((1, 2, hp, wp), lambda i, j: (i, 0, 0, 0)),
                x_spec,
            ],
            out_specs=pl.BlockSpec((1, c, rows, w), lambda i, j: (i, 0, j, 0)),
        ),
        compiler_params=cparams,
    )(params, comp_pad, x)

    return out


# ---------------------------------------------------------------------------
# Pure-JAX reference mirroring the PyTorch forward (BN in eval mode).
# ---------------------------------------------------------------------------
def _reference(x, conv_weight, bn_gamma, bn_beta, bn_mean, bn_var,
               bn_eps: float = 1e-5):
    mx = jnp.max(x, axis=1)
    mn = jnp.mean(x, axis=1)
    comp = jnp.stack([mx, mn], axis=1)                    # (N, 2, H, W)
    k = conv_weight.shape[-1]
    p = (k - 1) // 2
    comp_pad = jnp.pad(comp, ((0, 0), (0, 0), (p, p), (p, p)), mode="reflect")
    z = jax.lax.conv_general_dilated(
        comp_pad, conv_weight.reshape(1, 2, k, k),
        window_strides=(1, 1), padding="VALID",
        dimension_numbers=("NCHW", "OIHW", "NCHW"))
    z = (z - bn_mean) / jnp.sqrt(bn_var + bn_eps) * bn_gamma + bn_beta
    scale = jax.nn.sigmoid(z)
    return x * scale


if __name__ == "__main__":
    key = jax.random.PRNGKey(0)
    k_x, k_w = jax.random.split(key)

    kernel_size = 7
    x = jax.random.normal(k_x, (2, 4, 16, 16), dtype=jnp.float32)
    conv_w = jax.random.normal(
        k_w, (1, 2, kernel_size, kernel_size), dtype=jnp.float32) * 0.1

    # BatchNorm2d(1) at default init / running stats (eval mode).
    gamma = jnp.ones((), jnp.float32)
    beta = jnp.zeros((), jnp.float32)
    rmean = jnp.zeros((), jnp.float32)
    rvar = jnp.ones((), jnp.float32)

    out = spatial_atten_block(x, conv_w, gamma, beta, rmean, rvar)
    out = jax.block_until_ready(out)

    ref = _reference(x, conv_w, gamma, beta, rmean, rvar)
    assert out.shape == x.shape and out.dtype == x.dtype
    assert jnp.allclose(out, ref, atol=1e-5, rtol=1e-5), "mismatch vs reference"

    print("KERNEL_OK")
</pallas_src>

<mosaic_0001>
module attributes {stable_mosaic.version = 11 : i64} {
  func.func @_chan_reduce_kernel(%arg0: i32, %arg1: i32, %arg2: memref<1x4x16x16xf32, #tpu.memory_space<vmem>>, %arg3: memref<1x2x16x16xf32, #tpu.memory_space<vmem>>) attributes {dimension_semantics = [#tpu.dimension_semantics<parallel>, #tpu.dimension_semantics<parallel>], iteration_bounds = array<i64: 2, 1>, scalar_prefetch = 0 : i64, scratch_operands = 0 : i64, tpu.core_type = #tpu.core_type<tc>, window_params = [{transform_indices = @transform_0, window_bounds = array<i64: 1, 4, 16, 16>}, {transform_indices = @transform_1, window_bounds = array<i64: 1, 2, 16, 16>}]} {
    %c0 = arith.constant 0 : index
    %c0_0 = arith.constant 0 : index
    %c0_1 = arith.constant 0 : index
    %c0_2 = arith.constant 0 : index
    %0 = vector.load %arg2[%c0, %c0_0, %c0_1, %c0_2] : memref<1x4x16x16xf32, #tpu.memory_space<vmem>>, vector<1x4x16x16xf32>
    %1 = vector.shape_cast %0 : vector<1x4x16x16xf32> to vector<4x16x16xf32>
    %cst = arith.constant dense<0xFF800000> : vector<16x16xf32>
    %2 = vector.multi_reduction <maximumf>, %1, %cst [0] : vector<4x16x16xf32> to vector<16x16xf32>
    %c0_3 = arith.constant 0 : index
    %c0_4 = arith.constant 0 : index
    %c0_5 = arith.constant 0 : index
    %c0_6 = arith.constant 0 : index
    %3 = vector.load %arg3[%c0_3, %c0_4, %c0_5, %c0_6] : memref<1x2x16x16xf32, #tpu.memory_space<vmem>>, vector<1x1x16x16xf32>
    %4 = vector.shape_cast %3 : vector<1x1x16x16xf32> to vector<16x16xf32>
    %5 = vector.shape_cast %2 : vector<16x16xf32> to vector<1x1x16x16xf32>
    tpu.vector_store %arg3[%c0_3, %c0_4, %c0_5, %c0_6], %5 {strides = array<i32>} : memref<1x2x16x16xf32, #tpu.memory_space<vmem>>, vector<1x1x16x16xf32>,
    %cst_7 = arith.constant dense<0.000000e+00> : vector<16x16xf32>
    %6 = vector.multi_reduction <add>, %1, %cst_7 [0] : vector<4x16x16xf32> to vector<16x16xf32>
    %cst_8 = arith.constant 2.500000e-01 : f32
    %7 = vector.broadcast %cst_8 : f32 to vector<16x16xf32>
    %8 = arith.mulf %6, %7 : vector<16x16xf32>
    %c0_9 = arith.constant 0 : index
    %c1 = arith.constant 1 : index
    %c0_10 = arith.constant 0 : index
    %c0_11 = arith.constant 0 : index
    %9 = vector.load %arg3[%c0_9, %c1, %c0_10, %c0_11] : memref<1x2x16x16xf32, #tpu.memory_space<vmem>>, vector<1x1x16x16xf32>
    %10 = vector.shape_cast %9 : vector<1x1x16x16xf32> to vector<16x16xf32>
    %11 = vector.shape_cast %8 : vector<16x16xf32> to vector<1x1x16x16xf32>
    tpu.vector_store %arg3[%c0_9, %c1, %c0_10, %c0_11], %11 {strides = array<i32>} : memref<1x2x16x16xf32, #tpu.memory_space<vmem>>, vector<1x1x16x16xf32>,
    return
  }
  func.func @transform_0(%arg0: i32, %arg1: i32) -> (i32, i32, i32, i32) {
    %c0_i32 = arith.constant 0 : i32
    %c0_i32_0 = arith.constant 0 : i32
    %c0_i32_1 = arith.constant 0 : i32
    return %arg0, %c0_i32, %arg1, %c0_i32_0 : i32, i32, i32, i32
  }
  func.func @transform_1(%arg0: i32, %arg1: i32) -> (i32, i32, i32, i32) {
    %c0_i32 = arith.constant 0 : i32
    %c0_i32_0 = arith.constant 0 : i32
    %c0_i32_1 = arith.constant 0 : i32
    return %arg0, %c0_i32, %arg1, %c0_i32_0 : i32, i32, i32, i32
  }
}

</mosaic_0001>

<llo_original>
// kernel: tpu_custom_call.1
$region0: #{tpu_custom_call.1}
  #allocation0 [shape = 'u32[]', space=smem, size = 0x4, offset = 0x4, fixed_abs, tag = 'smem constant byte address 0x4 - core index']
  #allocation1 [shape = 'u32[144,128]{1,0:T(1,128)}', space=vmem, size = 0x12000, scoped, tag = 'internal scratch']
  %s0 = inlined_call_operand.hbm [shape: f32[2,4,16,16], index: 0, kind: input, shape index: {}]
  %s1 = inlined_call_operand.hbm [shape: f32[2,2,16,16], index: 1, kind: output, shape index: {}]
  %s2 = sld [smem:[#allocation0]]
  $region41: #{tpu_custom_call.1} parent=0
    _
  %s4 = ssub.s32 1, %s2
  %s5 = scalar_select 0, %s4, %s2
  $region1: #{tpu_custom_call.1} parent=0
    #allocation2 [shape = 'u8[65536]{0}', space=vmem, size = 0x10000, scoped, tag = 'input window, operand 0']
    #allocation3 [shape = 's32[2]{0}', space=sflag, size = 0x8, scoped, tag = 'scoped memory for tpu_custom_call.1']
    #allocation4 [shape = 's32[2]{0}', space=sflag, size = 0x8, scoped, tag = 'scoped memory for tpu_custom_call.1']
    #allocation5 [shape = 'u8[32768]{0}', space=vmem, size = 0x8000, scoped, tag = 'output window, operand 0']
    %6 = vsyncpa [#allocation3], 0
    %s7 = scalar_lea.sflag [#allocation3], 1
    %8 = vsyncpa %s7, 0
    %9 = vsyncpa [#allocation4], 0
    %s10 = scalar_lea.sflag [#allocation4], 1
    %11 = vsyncpa %s10, 0
    loop: start=0, step=1, limit=4
    $region2: #{tpu_custom_call.1} parent=1 // loop_pre_header
      _
    $region3: #{tpu_custom_call.1} parent=1 // loop_header
      %s13 = sphi 0, %s17
      %p14 = scmp.ge.s32.totalorder %s13, 4
      %s20 = sphi 0, %s32
      %s21 = sphi 0, %s28
      %s22 = sphi 0, %s20
      %s23 = sphi 0, %s21
      %s24 = sphi 0, %s22
      %s25 = sphi 0, %s23
      %s37 = sphi 0, %s39
      %s40 = sphi 0, %s37
      %s41 = sphi 0, %s40
      %s57 = sphi 0, %s41
      %s65 = sphi 0, %s67
      %s68 = sphi 0, %s65
      %s69 = sphi 0, %s68
      %s85 = sphi 0, %s69
    $region4: #{tpu_custom_call.1} parent=1 // loop_header_branch
      %16 = sbr.rel (%p14) target = $region8
    $region5: #{tpu_custom_call.1} parent=1 // loop_body
      %s18 = ssub.s32 %s13, 1
      %s19 = ssub.s32 %s13, 2
      %s26 = sadd.s32 1, %s21
      %p27 = scmp.ge.s32.totalorder %s26, 1
      %s28 = scalar_select %p27, 0, %s26
      %s29 = sadd.s32 1, %s20
      %s30 = scalar_select %p27, %s29, %s20
      %p31 = scmp.ge.s32.totalorder %s30, 2
      %s32 = scalar_select %p31, 0, %s30
      %s33 = ssub.s32 %s20, %s32
      %s34 = ssub.s32 %s21, %s28
      %s35 = sor.u32 %s33, %s34
      %p36 = scmp.eq.s32.totalorder %s35, 0
      %s38 = sadd.s32 %s37, 1
      %s39 = scalar_select %p36, %s37, %s38
      %p42 = pneg %p36
      %p43 = scmp.eq.s32.totalorder %s13, 1
      %p44 = por %p42, %p43
      %p45 = scmp.ne.s32.totalorder %s37, %s40
      %p46 = scmp.eq.s32.totalorder %s13, 0
      %p47 = por %p45, %p46
      %p48 = scmp.ne.s32.totalorder %s37, %s40
      %p49 = scmp.eq.s32.totalorder %s18, 1
      %p50 = por %p48, %p49
      %p51 = scmp.ne.s32.totalorder %s40, %s41
      %p52 = scmp.eq.s32.totalorder %s18, 0
      %p53 = por %p51, %p52
      %p54 = scmp.ne.s32.totalorder %s40, %s41
      %p55 = scmp.eq.s32.totalorder %s19, 1
      %p56 = por %p54, %p55
      %p58 = scmp.ne.s32.totalorder %s41, %s57
      %p59 = scmp.eq.s32.totalorder %s19, 0
      %p60 = por %p58, %p59
      %s61 = ssub.s32 %s20, %s32
      %s62 = ssub.s32 %s21, %s28
      %s63 = sor.u32 %s61, %s62
      %p64 = scmp.eq.s32.totalorder %s63, 0
      %s66 = sadd.s32 %s65, 1
      %s67 = scalar_select %p64, %s65, %s66
      %p70 = pneg %p64
      %p71 = scmp.eq.s32.totalorder %s13, 1
      %p72 = por %p70, %p71
      %p73 = scmp.ne.s32.totalorder %s65, %s68
      %p74 = scmp.eq.s32.totalorder %s13, 0
      %p75 = por %p73, %p74
      %p76 = scmp.ne.s32.totalorder %s65, %s68
      %p77 = scmp.eq.s32.totalorder %s18, 1
      %p78 = por %p76, %p77
      %p79 = scmp.ne.s32.totalorder %s68, %s69
      %p80 = scmp.eq.s32.totalorder %s18, 0
      %p81 = por %p79, %p80
      %p82 = scmp.ne.s32.totalorder %s68, %s69
      %p83 = scmp.eq.s32.totalorder %s19, 1
      %p84 = por %p82, %p83
      %p86 = scmp.ne.s32.totalorder %s69, %s85
      %p87 = scmp.eq.s32.totalorder %s19, 0
      %p88 = por %p86, %p87
      %p89 = scmp.le.s32.totalorder 1, %s13
      %p90 = scmp.lt.s32.totalorder %s13, 3
      %p91 = pnand %p89, %p90
      %p92 = pneg %p91
      // Predicated region
      $region9: #{tpu_custom_call.1} parent=5 // pred_check
        _
      $region10: #{tpu_custom_call.1} parent=5 // pred_check_branch
        %94 = sbr.rel (%p91) target = $region12
      $region11: #{tpu_custom_call.1} parent=5 // pred_region
        %s95 = ssub.s32 %s13, 1
      $region12: #{tpu_custom_call.1} parent=5 // pred_fallthru
        _
      %p96 = scmp.lt.s32.totalorder %s13, 2
      // Predicated region
      $region13: #{tpu_custom_call.1} parent=5 // pred_check
        %p97 = pneg %p96
      $region14: #{tpu_custom_call.1} parent=5 // pred_check_branch
        %99 = sbr.rel (%p97) target = $region16
      $region15: #{tpu_custom_call.1} parent=5 // pred_region
        // Predicated region
        $region17: #{tpu_custom_call.1} parent=15 // pred_check
          %p100 = pneg %p47
        $region18: #{tpu_custom_call.1} parent=15 // pred_check_branch
          %102 = sbr.rel (%p100) target = $region20
        $region19: #{tpu_custom_call.1} parent=15 // pred_region
          %s103 = sand.u32 %s37, 1
          %s104 = scalar_lea.sflag [#allocation3], %s103
          %s105 = sand.u32 %s37, 1
          %s106 = smul.addr %s105, 64
          %s107 = scalar_lea.vmem [#allocation2], %s106
          %s108 = smul.u32 2, %s21
          %s110 = ssub.s32 1024, 1024
          %111 = vsyncadd %s104, %s110
          %s112 = smul.addr %s20, 8
          %s113 = sadd.s32 %s108, %s112
          %s114 = smul.addr %s113, 128
          %s115 = scalar_lea.hbm %s0, %s114
          %s116 = sshll.u32 %s107, 4
          %s117 = int_to_ptr.vmem [resolvable:$true] %s116
          %122 = dma.hbm_to_vmem [thread:$0]  %s115, 1024, %s117, %s104, 128, 128, 8
        $region20: #{tpu_custom_call.1} parent=15 // pred_fallthru
          _
      $region16: #{tpu_custom_call.1} parent=5 // pred_fallthru
        _
      %p123 = scmp.le.s32.totalorder 1, %s13
      %p124 = scmp.lt.s32.totalorder %s13, 3
      %p125 = pnand %p123, %p124
      %p126 = pneg %p125
      // Predicated region
      $region21: #{tpu_custom_call.1} parent=5 // pred_check
        _
      $region22: #{tpu_custom_call.1} parent=5 // pred_check_branch
        %128 = sbr.rel (%p125) target = $region24
      $region23: #{tpu_custom_call.1} parent=5 // pred_region
        %s129 = ssub.s32 %s13, 1
        %s130 = sand.u32 %s40, 1
        %s131 = scalar_lea.sflag [#allocation3], %s130
        %s132 = sand.u32 %s40, 1
        %s133 = smul.addr %s132, 64
        %s134 = scalar_lea.vmem [#allocation2], %s133
        // Predicated region
        $region25: #{tpu_custom_call.1} parent=23 // pred_check
          %p135 = pneg %p53
        $region26: #{tpu_custom_call.1} parent=23 // pred_check_branch
          %137 = sbr.rel (%p135) target = $region28
        $region27: #{tpu_custom_call.1} parent=23 // pred_region
          %138 = dma.done %s131, 1024
        $region28: #{tpu_custom_call.1} parent=23 // pred_fallthru
          _
        %s139 = sand.u32 %s40, 1
        %s140 = scalar_lea.sflag [#allocation3], %s139
        %s141 = sand.u32 %s40, 1
        %s142 = smul.addr %s141, 64
        %s143 = scalar_lea.vmem [#allocation2], %s142
        %p144 = pneg %p53
        %p145 = pneg %p50
        %p146 = pneg %p81
        %p147 = pneg %p78
        %s148 = sand.u32 %s68, 1
        %s149 = scalar_lea.sflag [#allocation4], %s148
        %s150 = sand.u32 %s68, 1
        %s151 = smul.addr %s150, 32
        %s152 = scalar_lea.vmem [#allocation5], %s151
        %s153 = smul.u32 2, %s23
        %s154 = smul.u32 2, %s23
        %v155 = vld [vmem:[%s134] sm:$0xff]
        %v156 = vld [vmem:[%s134 + $0x8] sm:$0xff]
        %v157 = vld [vmem:[%s134 + $0x10] sm:$0xff]
        %v158 = vld [vmem:[%s134 + $0x18] sm:$0xff]
        %v159 = vld [vmem:[%s134 + $0x20] sm:$0xff]
        %v160 = vld [vmem:[%s134 + $0x28] sm:$0xff]
        %v161 = vld [vmem:[%s134 + $0x30] sm:$0xff]
        %v162 = vld [vmem:[%s134 + $0x38] sm:$0xff]
        %vm163 = vcmask 130048
        %v164 = vsel %vm163, %v155, -inf
        %v165 = vsel %vm163, %v157, -inf
        %v166 = vsel %vm163, %v159, -inf
        %v167 = vmax.f32 %v164, %v166
        %v168 = vsel %vm163, %v161, -inf
        %v169 = vmax.f32 %v165, %v168
        %v170 = vmax.f32 %v167, %v169
        %v171 = vsel %vm163, %v156, -inf
        %v172 = vsel %vm163, %v158, -inf
        %v173 = vsel %vm163, %v160, -inf
        %v174 = vmax.f32 %v171, %v173
        %v175 = vsel %vm163, %v162, -inf
        %v176 = vmax.f32 %v172, %v175
        %v177 = vmax.f32 %v174, %v176
        %178 = vst.msk [vmem:[%s152] sm:$0xff] %vm163, %v170
        %179 = vst.msk [vmem:[%s152 + $0x8] sm:$0xff] %vm163, %v177
        %v180 = vsel %vm163, %v155, 0.0
        %v181 = vsel %vm163, %v157, 0.0
        %v182 = vadd.f32 %v180, %v181
        %v183 = vsel %vm163, %v159, 0.0
        %v184 = vadd.f32 %v182, %v183
        %v185 = vsel %vm163, %v161, 0.0
        %v186 = vadd.f32 %v184, %v185
        %v187 = vsel %vm163, %v156, 0.0
        %v188 = vsel %vm163, %v158, 0.0
        %v189 = vadd.f32 %v187, %v188
        %v190 = vsel %vm163, %v160, 0.0
        %v191 = vadd.f32 %v189, %v190
        %v192 = vsel %vm163, %v162, 0.0
        %v193 = vadd.f32 %v191, %v192
        %v194 = vmul.f32 %v186, 0.25
        %v195 = vmul.f32 %v193, 0.25
        %s196 = scalar_lea.vmem %s152, 16 [#allocation5]
        %197 = vst.msk [vmem:[%s196] sm:$0xff] %vm163, %v194
        %198 = vst.msk [vmem:[%s196 + $0x8] sm:$0xff] %vm163, %v195
        %s199 = sand.u32 %s68, 1
        %s200 = scalar_lea.sflag [#allocation4], %s199
        %s201 = sand.u32 %s68, 1
        %s202 = smul.addr %s201, 32
        %s203 = scalar_lea.vmem [#allocation5], %s202
        // Predicated region
        $region29: #{tpu_custom_call.1} parent=23 // pred_check
          %p204 = pneg %p78
        $region30: #{tpu_custom_call.1} parent=23 // pred_check_branch
          %206 = sbr.rel (%p204) target = $region32
        $region31: #{tpu_custom_call.1} parent=23 // pred_region
          %s207 = smul.u32 2, %s23
          %s209 = ssub.s32 512, 512
          %210 = vsyncadd %s200, %s209
          %s211 = smul.addr %s22, 4
          %s212 = sadd.s32 %s207, %s211
          %s213 = smul.addr %s212, 128
          %s214 = scalar_lea.hbm %s1, %s213
          %s215 = sshll.u32 %s203, 4
          %s216 = int_to_ptr.vmem [resolvable:$true] %s215
          %221 = dma.vmem_to_hbm [thread:$0]  %s216, 512, %s214, %s200, 128, 128, 8
        $region32: #{tpu_custom_call.1} parent=23 // pred_fallthru
          _
      $region24: #{tpu_custom_call.1} parent=5 // pred_fallthru
        _
      %p222 = scmp.le.s32.totalorder 2, %s13
      // Predicated region
      $region33: #{tpu_custom_call.1} parent=5 // pred_check
        %p223 = pneg %p222
      $region34: #{tpu_custom_call.1} parent=5 // pred_check_branch
        %225 = sbr.rel (%p223) target = $region36
      $region35: #{tpu_custom_call.1} parent=5 // pred_region
        %s226 = ssub.s32 %s13, 2
        // Predicated region
        $region37: #{tpu_custom_call.1} parent=35 // pred_check
          %p227 = pneg %p84
        $region38: #{tpu_custom_call.1} parent=35 // pred_check_branch
          %229 = sbr.rel (%p227) target = $region40
        $region39: #{tpu_custom_call.1} parent=35 // pred_region
          %s230 = sand.u32 %s69, 1
          %s231 = scalar_lea.sflag [#allocation4], %s230
          %s232 = sand.u32 %s69, 1
          %s233 = smul.addr %s232, 32
          %s234 = scalar_lea.vmem [#allocation5], %s233
          %235 = dma.done %s231, 512
        $region40: #{tpu_custom_call.1} parent=35 // pred_fallthru
          _
      $region36: #{tpu_custom_call.1} parent=5 // pred_fallthru
        _
    $region6: #{tpu_custom_call.1} parent=1 // loop_footer
      %s17 = sadd.s32 1, %s13
    $region7: #{tpu_custom_call.1} parent=1 // loop_footer_branch
      %12 = sbr.rel target = $region3
    $region8: #{tpu_custom_call.1} parent=1 // loop_exit
      _
    %236 = vsyncpa [#allocation3], 1
    %s237 = scalar_lea.sflag [#allocation3], 1
    %238 = vsyncpa %s237, 1
    %239 = vsyncpa [#allocation4], 1
    %s240 = scalar_lea.sflag [#allocation4], 1
    %241 = vsyncpa %s240, 1

</llo_original>
